<compile_context>
chip_gen: v5e
topology: v5e:2x2
jax: 0.10.0
libtpu: 0.0.40
codegen_flags: <defaults>
</compile_context>

<pallas_src>
import jax
import jax.numpy as jnp
from jax import lax
from jax.experimental import pallas as pl
from jax.experimental.pallas import tpu as pltpu


# Scoped VMEM budget: > default scoped limits (v5e 16 MiB, v6e/v7x 32 MiB) so
# large tiles double-buffer, and comfortably < v7x's 64 MiB physical VMEM.
_VMEM_LIMIT_BYTES = 48 << 20


def _linear_kernel(x_ref, w_ref, b_ref, o_ref):
    # x_ref: [TB, F], w_ref: [C, F] (PyTorch layout), b_ref: [1, C], o_ref: [TB, C]
    acc = lax.dot_general(
        x_ref[...], w_ref[...],
        dimension_numbers=(((1,), (1,)), ((), ())),   # contract F with F -> [TB, C]
        preferred_element_type=jnp.float32,
    )
    o_ref[...] = (acc + b_ref[...]).astype(o_ref.dtype)


def _round_up(v, m):
    return ((v + m - 1) // m) * m


def _round_down(v, m):
    return (v // m) * m


def patchrot_classifier_forward(x, weight, bias, *, tb_max=8192):
    """x: [B, 192], weight: [C, 192] (PyTorch nn.Linear layout), bias: [C]."""
    B, F = x.shape
    C = weight.shape[0]
    b2 = bias.reshape(1, C)

    itemsize = jnp.dtype(x.dtype).itemsize

    # ---- Lane-padding-aware VMEM budgeting for the batch tile ----
    # Per batch row, per buffer: x padded to a 128-lane multiple (192 -> 256),
    # out padded to 128 lanes (4 -> 128, 32x inflation). Double-buffered by the
    # BlockSpec pipeline. f32: 2 * (1024 + 512) = 3 KiB / row.
    x_row_bytes = _round_up(F, 128) * itemsize
    o_row_bytes = _round_up(C, 128) * itemsize
    row_bytes_2buf = 2 * (x_row_bytes + o_row_bytes)
    # Keep double-buffered tiles within ~3/4 of the scoped limit (weight/bias tiny).
    tb_budget = max(16, _round_down((3 * _VMEM_LIMIT_BYTES // 4) // row_bytes_2buf, 16))
    tb_cap = min(tb_max, tb_budget)

    if B <= tb_cap:
        TB = B                                   # full-extent batch block: always legal
    else:
        TB = max(16, _round_down(tb_cap, 16))    # multiple of 16: legal for f32 and bf16
    grid = (pl.cdiv(B, TB),)

    cost = pl.CostEstimate(
        flops=2 * B * F * C,
        transcendentals=0,
        bytes_accessed=(B * F * itemsize
                        + C * F * jnp.dtype(weight.dtype).itemsize
                        + C * jnp.dtype(bias.dtype).itemsize
                        + B * C * itemsize),
    )

    return pl.pallas_call(
        _linear_kernel,
        out_shape=jax.ShapeDtypeStruct((B, C), x.dtype),
        grid_spec=pltpu.PrefetchScalarGridSpec(
            num_scalar_prefetch=0,
            grid=grid,
            in_specs=[
                pl.BlockSpec((TB, F), lambda i: (i, 0)),   # x: tiled along batch
                pl.BlockSpec((C, F), lambda i: (0, 0)),    # weight: VMEM-resident
                pl.BlockSpec((1, C), lambda i: (0, 0)),    # bias: VMEM-resident
            ],
            out_specs=pl.BlockSpec((TB, C), lambda i: (i, 0)),
        ),
        compiler_params=pltpu.CompilerParams(
            dimension_semantics=("parallel",),             # shard batch across TCs (v7x)
            vmem_limit_bytes=_VMEM_LIMIT_BYTES,
        ),
        cost_estimate=cost,
    )(x, weight, b2)


def init_params(key, n_classes=4, in_features=192):
    kw, kb = jax.random.split(key)
    # kaiming_normal_ (fan_in mode, relu gain): std = sqrt(2 / fan_in)
    std = (2.0 / in_features) ** 0.5
    weight = std * jax.random.normal(kw, (n_classes, in_features), dtype=jnp.float32)
    # PyTorch nn.Linear default bias init: U(-1/sqrt(fan_in), 1/sqrt(fan_in))
    bound = 1.0 / (in_features ** 0.5)
    bias = jax.random.uniform(kb, (n_classes,), minval=-bound, maxval=bound,
                              dtype=jnp.float32)
    return weight, bias


if __name__ == "__main__":
    key = jax.random.PRNGKey(0)
    kx, kx2, kx3, kp = jax.random.split(key, 4)

    F, C = 192, 4
    weight, bias = init_params(kp, n_classes=C, in_features=F)

    # Case 1: tiny batch (single grid step, full-extent batch block), f32.
    B1 = 8
    x1 = jax.random.normal(kx, (B1, F), dtype=jnp.float32)
    out1 = jax.block_until_ready(patchrot_classifier_forward(x1, weight, bias))
    ref1 = x1 @ weight.T + bias
    assert out1.shape == (B1, C)
    assert jnp.allclose(out1, ref1, atol=1e-5, rtol=1e-5)

    # Case 2: exercise the batch grid + partial last block (tb_max forced small).
    B2 = 40
    x2 = jax.random.normal(kx2, (B2, F), dtype=jnp.float32)
    out2 = jax.block_until_ready(
        patchrot_classifier_forward(x2, weight, bias, tb_max=16))
    ref2 = x2 @ weight.T + bias
    assert out2.shape == (B2, C)
    assert jnp.allclose(out2, ref2, atol=1e-5, rtol=1e-5)

    # Case 3: bf16 activations + bf16 weights (f32 accumulation in-kernel).
    B3 = 32
    x3 = jax.random.normal(kx3, (B3, F), dtype=jnp.float32).astype(jnp.bfloat16)
    w_bf16 = weight.astype(jnp.bfloat16)
    b_bf16 = bias.astype(jnp.bfloat16)
    out3 = jax.block_until_ready(
        patchrot_classifier_forward(x3, w_bf16, b_bf16))
    ref3 = (x3.astype(jnp.float32) @ w_bf16.astype(jnp.float32).T
            + b_bf16.astype(jnp.float32))
    assert out3.shape == (B3, C)
    assert jnp.allclose(out3.astype(jnp.float32), ref3, atol=5e-2, rtol=5e-2)

    print("KERNEL_OK")
</pallas_src>

<mosaic_0001>
module attributes {stable_mosaic.version = 11 : i64} {
  func.func @_linear_kernel(%arg0: i32, %arg1: memref<8x192xf32, #tpu.memory_space<vmem>>, %arg2: memref<4x192xf32, #tpu.memory_space<vmem>>, %arg3: memref<1x4xf32, #tpu.memory_space<vmem>>, %arg4: memref<8x4xf32, #tpu.memory_space<vmem>>) attributes {dimension_semantics = [#tpu.dimension_semantics<parallel>], iteration_bounds = array<i64: 1>, scalar_prefetch = 0 : i64, scratch_operands = 0 : i64, tpu.core_type = #tpu.core_type<tc>, window_params = [{transform_indices = @transform_0, window_bounds = array<i64: 8, 192>}, {pipeline_mode = #tpu.pipeline_mode<synchronous>, transform_indices = @transform_1, window_bounds = array<i64: 4, 192>}, {pipeline_mode = #tpu.pipeline_mode<synchronous>, transform_indices = @transform_2, window_bounds = array<i64: 1, 4>}, {transform_indices = @transform_3, window_bounds = array<i64: 8, 4>}]} {
    %c0 = arith.constant 0 : index
    %c0_0 = arith.constant 0 : index
    %0 = vector.load %arg1[%c0, %c0_0] : memref<8x192xf32, #tpu.memory_space<vmem>>, vector<8x192xf32>
    %c0_1 = arith.constant 0 : index
    %c0_2 = arith.constant 0 : index
    %1 = vector.load %arg2[%c0_1, %c0_2] : memref<4x192xf32, #tpu.memory_space<vmem>>, vector<4x192xf32>
    %cst = arith.constant dense<0.000000e+00> : vector<8x4xf32>
    %2 = tpu.matmul %0, %1, %cst {dimension_numbers = #tpu.dot_dimension_numbers<[1], [1], [0], [0], [0, 0, 1, 0], [], []>} : vector<8x192xf32>, vector<4x192xf32>, vector<8x4xf32> -> vector<8x4xf32>
    %c0_3 = arith.constant 0 : index
    %c0_4 = arith.constant 0 : index
    %3 = vector.load %arg3[%c0_3, %c0_4] : memref<1x4xf32, #tpu.memory_space<vmem>>, vector<1x4xf32>
    %4 = vector.broadcast %3 : vector<1x4xf32> to vector<8x4xf32>
    %5 = arith.addf %2, %4 : vector<8x4xf32>
    %c0_5 = arith.constant 0 : index
    %c0_6 = arith.constant 0 : index
    %6 = vector.load %arg4[%c0_5, %c0_6] : memref<8x4xf32, #tpu.memory_space<vmem>>, vector<8x4xf32>
    tpu.vector_store %arg4[%c0_5, %c0_6], %5 {strides = array<i32>} : memref<8x4xf32, #tpu.memory_space<vmem>>, vector<8x4xf32>,
    return
  }
  func.func @transform_0(%arg0: i32) -> (i32, i32) {
    %c0_i32 = arith.constant 0 : i32
    %c0_i32_0 = arith.constant 0 : i32
    return %arg0, %c0_i32 : i32, i32
  }
  func.func @transform_1(%arg0: i32) -> (i32, i32) {
    %c0_i32 = arith.constant 0 : i32
    %c0_i32_0 = arith.constant 0 : i32
    %c0_i32_1 = arith.constant 0 : i32
    return %c0_i32, %c0_i32_0 : i32, i32
  }
  func.func @transform_2(%arg0: i32) -> (i32, i32) {
    %c0_i32 = arith.constant 0 : i32
    %c0_i32_0 = arith.constant 0 : i32
    %c0_i32_1 = arith.constant 0 : i32
    return %c0_i32, %c0_i32_0 : i32, i32
  }
  func.func @transform_3(%arg0: i32) -> (i32, i32) {
    %c0_i32 = arith.constant 0 : i32
    %c0_i32_0 = arith.constant 0 : i32
    return %arg0, %c0_i32 : i32, i32
  }
}

</mosaic_0001>

<llo_original>
// kernel: tpu_custom_call.1
$region0: #{tpu_custom_call.1}
  #allocation0 [shape = 'u32[]', space=smem, size = 0x4, offset = 0x4, fixed_abs, tag = 'smem constant byte address 0x4 - core index']
  #allocation1 [shape = 'u32[72,128]{1,0:T(1,128)}', space=vmem, size = 0x9000, scoped, tag = 'internal scratch']
  %s0 = inlined_call_operand.hbm [shape: f32[8,192], index: 0, kind: input, shape index: {}]
  %s1 = inlined_call_operand.hbm [shape: f32[4,192], index: 1, kind: input, shape index: {}]
  %s2 = inlined_call_operand.vmem [shape: f32[1,4], index: 2, kind: input, shape index: {}]
  %s3 = inlined_call_operand.vmem [shape: f32[8,4], index: 3, kind: output, shape index: {}]
  %s4 = sld [smem:[#allocation0]]
  $region30: #{tpu_custom_call.1} parent=0
    _
  %s6 = ssub.s32 1, %s4
  %s7 = scalar_select 0, %s6, %s4
  $region1: #{tpu_custom_call.1} parent=0
    #allocation2 [shape = 'u8[8192]{0}', space=vmem, size = 0x2000, scoped, tag = 'input window, operand 0, single buffered']
    #allocation3 [shape = 's32[1]{0}', space=sflag, size = 0x4, scoped, tag = 'scoped memory for tpu_custom_call.1']
    #allocation4 [shape = 'u8[4096]{0}', space=vmem, size = 0x1000, scoped, tag = 'input window, operand 1, single buffered']
    #allocation5 [shape = 's32[1]{0}', space=sflag, size = 0x4, scoped, tag = 'scoped memory for tpu_custom_call.1']
    %8 = vsyncpa [#allocation3], 0
    %9 = vsyncpa [#allocation5], 0
    // Predicated region
    $region2: #{tpu_custom_call.1} parent=1 // pred_check
      _
    $region3: #{tpu_custom_call.1} parent=1 // pred_check_branch
      %11 = sbr.rel (0) target = $region5
    $region4: #{tpu_custom_call.1} parent=1 // pred_region
      %13 = vsyncadd [#allocation3], 0
      %s15 = sshll.u32 %s0, 4
      %s16 = int_to_ptr.hbm [resolvable:$true] %s15
      %s17 = sshll.u32 [#allocation2], 4
      %s18 = int_to_ptr.vmem [resolvable:$true] %s17
      %20 = dma.hbm_to_vmem [thread:$0]  %s16, 256, %s18, [#allocation3]
    $region5: #{tpu_custom_call.1} parent=1 // pred_fallthru
      _
    // Predicated region
    $region6: #{tpu_custom_call.1} parent=1 // pred_check
      _
    $region7: #{tpu_custom_call.1} parent=1 // pred_check_branch
      %22 = sbr.rel (0) target = $region9
    $region8: #{tpu_custom_call.1} parent=1 // pred_region
      %24 = vsyncadd [#allocation5], 0
      %s26 = sshll.u32 %s1, 4
      %s27 = int_to_ptr.hbm [resolvable:$true] %s26
      %s28 = sshll.u32 [#allocation4], 4
      %s29 = int_to_ptr.vmem [resolvable:$true] %s28
      %31 = dma.hbm_to_vmem [thread:$0]  %s27, 128, %s29, [#allocation5]
    $region9: #{tpu_custom_call.1} parent=1 // pred_fallthru
      _
    // Predicated region
    $region10: #{tpu_custom_call.1} parent=1 // pred_check
      _
    $region11: #{tpu_custom_call.1} parent=1 // pred_check_branch
      %33 = sbr.rel (0) target = $region13
    $region12: #{tpu_custom_call.1} parent=1 // pred_region
      _
    $region13: #{tpu_custom_call.1} parent=1 // pred_fallthru
      _
    // Predicated region
    $region14: #{tpu_custom_call.1} parent=1 // pred_check
      _
    $region15: #{tpu_custom_call.1} parent=1 // pred_check_branch
      %35 = sbr.rel (0) target = $region17
    $region16: #{tpu_custom_call.1} parent=1 // pred_region
      %37 = dma.done [#allocation3], 256
    $region17: #{tpu_custom_call.1} parent=1 // pred_fallthru
      _
    // Predicated region
    $region18: #{tpu_custom_call.1} parent=1 // pred_check
      _
    $region19: #{tpu_custom_call.1} parent=1 // pred_check_branch
      %39 = sbr.rel (0) target = $region21
    $region20: #{tpu_custom_call.1} parent=1 // pred_region
      %41 = dma.done [#allocation5], 128
    $region21: #{tpu_custom_call.1} parent=1 // pred_fallthru
      _
    %v42 = vld [vmem:[#allocation2] sm:$0xff]
    %v43 = vld [vmem:[#allocation2 + $0x8] sm:$0xff]
    %v44 = vld [vmem:[#allocation4] sm:$0xff]
    %v45 = vld [vmem:[%s2] sm:$0x1]
    %v47 = vperm.slane %v45, 0
    %50 = vst [vmem:[#allocation1] ss:$2 sm:$0xff] %v44
    %v51 = vld.sshfl [vmem:[#allocation1] sm:$0xff pattern:$0x75316420]
    %v52 = vld.sshfl [vmem:[#allocation1 + $0x8] sm:$0xff pattern:$0x75316420]
    %vm54 = vcmask 523264
    %v56 = vsel %vm54, %v43, 0
    %v58 = vsel %vm54, %v52, 0
    %60 = vmatpush.xpose.msra.mxu0 0.0
    %61 = vmatpush.xpose.msra.mxu0 0.0
    %62 = vmatpush.xpose.msra.mxu0 0.0
    %63 = vmatpush.xpose.msra.mxu0 0.0
    %64 = vmatpush.xpose.msra.mxu0 0.0
    %65 = vmatpush.xpose.msra.mxu0 0.0
    %66 = vmatpush.xpose.msra.mxu0 0.0
    %67 = vmatpush.xpose.msra.mxu0 0.0
    %68 = vmatpush.xpose.msra.mxu0 0.0
    %69 = vmatpush.xpose.msra.mxu0 0.0
    %70 = vmatpush.xpose.msra.mxu0 0.0
    %71 = vmatpush.xpose.msra.mxu0 0.0
    %72 = vmatpush.xpose.msra.mxu0 0.0
    %73 = vmatpush.xpose.msra.mxu0 0.0
    %74 = vmatpush.xpose.msra.mxu0 0.0
    %75 = vmatpush.xpose.msra.mxu0 %v51
    %76 = vmatmul.f32.gmra.mxu0 %v42
    %v77 = vpop.f32.mrf.mxu0
    %v78 = vadd.f32 %v47, %v77
    %79 = vdwg.mxu0
    %80 = vmatpush.xpose.msra.mxu0 0.0
    %81 = vmatpush.xpose.msra.mxu0 0.0
    %82 = vmatpush.xpose.msra.mxu0 0.0
    %83 = vmatpush.xpose.msra.mxu0 0.0
    %84 = vmatpush.xpose.msra.mxu0 0.0
    %85 = vmatpush.xpose.msra.mxu0 0.0
    %86 = vmatpush.xpose.msra.mxu0 0.0
    %87 = vmatpush.xpose.msra.mxu0 0.0
    %88 = vmatpush.xpose.msra.mxu0 0.0
    %89 = vmatpush.xpose.msra.mxu0 0.0
    %90 = vmatpush.xpose.msra.mxu0 0.0
    %91 = vmatpush.xpose.msra.mxu0 0.0
    %92 = vmatpush.xpose.msra.mxu0 0.0
    %93 = vmatpush.xpose.msra.mxu0 0.0
    %94 = vmatpush.xpose.msra.mxu0 0.0
    %95 = vmatpush.xpose.msra.mxu0 %v58
    %96 = vmatmul.f32.gmra.mxu0 %v56
    %v97 = vpop.f32.mrf.mxu0
    %v98 = vadd.f32 %v78, %v97
    %99 = vdwg.mxu0
    %vm100 = vcmask 31744
    %101 = vst.msk [vmem:[%s3] sm:$0xff] %vm100, %v98
    // Predicated region
    $region22: #{tpu_custom_call.1} parent=1 // pred_check
      _
    $region23: #{tpu_custom_call.1} parent=1 // pred_check_branch
      %103 = sbr.rel (0) target = $region25
    $region24: #{tpu_custom_call.1} parent=1 // pred_region
      _
    $region25: #{tpu_custom_call.1} parent=1 // pred_fallthru
      _
    // Predicated region
    $region26: #{tpu_custom_call.1} parent=1 // pred_check
      _
    $region27: #{tpu_custom_call.1} parent=1 // pred_check_branch
      %105 = sbr.rel (0) target = $region29
    $region28: #{tpu_custom_call.1} parent=1 // pred_region
      _
    $region29: #{tpu_custom_call.1} parent=1 // pred_fallthru
      _
    %106 = vsyncpa [#allocation3], 1
    %107 = vsyncpa [#allocation5], 1

</llo_original>
